<compile_context>
chip_gen: v7x
topology: tpu7x:2x2x1
jax: 0.10.0
libtpu: 0.0.40
codegen_flags: <defaults>
</compile_context>

<pallas_src>
import functools

import jax
import jax.numpy as jnp
from jax import lax
from jax.experimental import pallas as pl
from jax.experimental.pallas import tpu as pltpu


_LANE = 128      # lane width: pad hidden/output feature dims to multiples
_SUBLANE = 8     # sublane: batch tiles are multiples of this
_MAX_BM = 256    # batch-tile cap (v7x 64 MiB VMEM / v5e register-pressure friendly)


def _round_up(x, m):
    return ((x + m - 1) // m) * m


_ACT_MAP = {
    "Relu": "relu",
    "Sigmoid": "sigmoid",
    "Softmax": "softmax",
    "Tanh": "tanh",
    "Leaky_relu": "leaky_relu",
}


# ----------------------------- Pallas kernel ------------------------------ #
def _apply_activation(y, activation, real_dim):
    """Elementwise activation on a padded (bm, dout_pad) f32 tile."""
    if activation == "relu":
        return jnp.maximum(y, 0.0)
    if activation == "sigmoid":
        return jax.nn.sigmoid(y)
    if activation == "tanh":
        return jnp.tanh(y)
    if activation == "leaky_relu":
        return jnp.where(y >= 0.0, y, 0.01 * y)
    if activation == "softmax":
        # softmax over the feature axis (PyTorch nn.Softmax(dim=1)).
        # Padded lanes (>= real_dim) are masked to -inf so they contribute 0.
        lane = lax.broadcasted_iota(jnp.int32, y.shape, dimension=y.ndim - 1)
        y = jnp.where(lane < real_dim, y, -jnp.inf)
        m = jnp.max(y, axis=-1, keepdims=True)
        e = jnp.exp(y - m)
        # exact divide: approx reciprocal (~1e-4 rel err) would break tight tolerances
        return e / jnp.sum(e, axis=-1, keepdims=True)
    if activation == "none":
        return y
    raise ValueError(f"unsupported activation: {activation}")


def _mlp_fused_kernel(*refs, num_layers, activation, real_out_dims):
    """Fused forward for one batch tile: all Linear+act layers + final Sigmoid.

    refs layout: (x_ref, w0, b0, w1, b1, ..., w_{L-1}, b_{L-1}, out_ref).
    Weights are (din[_pad], dout_pad) (possibly bf16); biases are (1, dout_pad)
    f32; hidden/output feature dims are zero-padded so padded lanes never leak
    into real outputs and stores stay lane-dense.
    """
    x_ref = refs[0]
    out_ref = refs[-1]
    wb_refs = refs[1:-1]

    h = x_ref[...].astype(jnp.float32)
    for layer in range(num_layers):
        w_ref = wb_refs[2 * layer]
        b_ref = wb_refs[2 * layer + 1]
        # Feed the MXU in the weight dtype (bf16 on v6e/v7x), accumulate in f32.
        y = jnp.dot(h.astype(w_ref.dtype), w_ref[...],
                    preferred_element_type=jnp.float32)
        y = y + b_ref[...].astype(jnp.float32)   # (1, dout_pad) broadcasts
        if layer == num_layers - 1:
            # final Linear fused with the trailing nn.Sigmoid
            y = jax.nn.sigmoid(y)
        else:
            y = _apply_activation(y, activation, real_out_dims[layer])
            # TODO(synk): nn.Dropout is identity at inference; training-mode
            # stochastic dropout (pltpu.prng_*) is not implemented.
        h = y
    out_ref[...] = h.astype(out_ref.dtype)


# ------------------------------- wrappers ---------------------------------- #
def prepare_params(params, param_dtype=jnp.float32):
    """Pad weights/biases ONCE (call at init, reuse across forwards).

    * first layer's input-feature dim is kept unpadded (MXU pads K internally)
    * hidden/output feature dims are padded to multiples of 128 (lane-dense)
    * weights optionally stored in bf16 (v6e/v7x MXU); biases stay f32
    """
    real_dims = (params[0][0].shape[0],) + tuple(w.shape[1] for w, _ in params)
    pdims = (real_dims[0],) + tuple(_round_up(d, _LANE) for d in real_dims[1:])
    padded_wb = []
    for li, (w, b) in enumerate(params):
        din, dout = w.shape
        pw = jnp.zeros((pdims[li], pdims[li + 1]), param_dtype)
        pw = pw.at[:din, :dout].set(w.astype(param_dtype))
        pb = jnp.zeros((1, pdims[li + 1]), jnp.float32)
        pb = pb.at[0, :dout].set(b.astype(jnp.float32))
        padded_wb += [pw, pb]
    return {"padded_wb": tuple(padded_wb), "real_dims": real_dims, "pdims": pdims}


def _pick_block_batch(batch, max_bm=_MAX_BM):
    """Batch tile: multiple of 8, small padding, >=2 grid steps when batch>8
    so the parallel grid axis can shard across both v7x TensorCores."""
    b8 = _round_up(batch, _SUBLANE)
    n_tiles = max(pl.cdiv(b8, max_bm), 2 if b8 > _SUBLANE else 1)
    return _round_up(pl.cdiv(b8, n_tiles), _SUBLANE)


@functools.partial(
    jax.jit,
    static_argnames=("activation", "real_dims", "pdims", "block_batch",
                     "single_buffer_weights"),
)
def _mlp_forward_impl(padded_wb, x, *, activation, real_dims, pdims,
                      block_batch, single_buffer_weights):
    B, din = x.shape
    assert din == pdims[0]
    num_layers = len(real_dims) - 1
    bm = block_batch

    grid = pl.cdiv(_round_up(B, _SUBLANE), bm)
    b_pad = grid * bm
    if b_pad != B:
        x = jnp.pad(x, ((0, b_pad - B), (0, 0)))   # few rows only; fuses under jit

    kernel = functools.partial(
        _mlp_fused_kernel,
        num_layers=num_layers,
        activation=activation,
        real_out_dims=real_dims[1:],
    )

    # Batch tiles stream through the grid; weights/biases stay VMEM-resident
    # (constant index_map) and, when supported, single-buffered.
    wb_kwargs = dict(pipeline_mode=pl.Buffered(1)) if single_buffer_weights else {}
    in_specs = [pl.BlockSpec((bm, pdims[0]), lambda i: (i, 0))]
    for li in range(num_layers):
        in_specs.append(
            pl.BlockSpec((pdims[li], pdims[li + 1]), lambda i: (0, 0), **wb_kwargs))
        in_specs.append(
            pl.BlockSpec((1, pdims[li + 1]), lambda i: (0, 0), **wb_kwargs))
    out_spec = pl.BlockSpec((bm, pdims[-1]), lambda i: (i, 0))

    # VMEM budget: double-buffered x/out tiles + resident weight slabs
    # (x1 or x2 depending on buffering) + live intermediate h/y headroom.
    act_bytes = x.dtype.itemsize
    wb_bytes = sum(int(a.size) * a.dtype.itemsize for a in padded_wb)
    wb_bufs = 1 if single_buffer_weights else 2
    vmem_est = (2 * bm * (pdims[0] + pdims[-1]) * act_bytes
                + wb_bufs * wb_bytes
                + 2 * bm * max(pdims) * 4)
    vmem_limit = int(min(64 * 2**20, max(32 * 2**20, 2 * vmem_est)))

    # Advisory cost estimate for XLA's scheduler.
    flops = sum(2 * b_pad * pdims[i] * pdims[i + 1] for i in range(num_layers))
    bytes_accessed = (int(x.size) * act_bytes + wb_bytes
                      + b_pad * pdims[-1] * act_bytes)
    transcendentals = b_pad * pdims[-1]  # final sigmoid
    if activation in ("sigmoid", "tanh", "softmax"):
        transcendentals += sum(b_pad * pdims[i + 1] for i in range(num_layers - 1))

    out_padded = pl.pallas_call(
        kernel,
        out_shape=jax.ShapeDtypeStruct((b_pad, pdims[-1]), x.dtype),
        grid_spec=pl.GridSpec(grid=(grid,), in_specs=in_specs, out_specs=out_spec),
        compiler_params=pltpu.CompilerParams(
            dimension_semantics=("parallel",),
            vmem_limit_bytes=vmem_limit,
        ),
        cost_estimate=pl.CostEstimate(
            flops=flops,
            transcendentals=transcendentals,
            bytes_accessed=bytes_accessed,
        ),
    )(x, *padded_wb)

    # Slice the lane-dense slab back to the real output shape.
    return out_padded[:B, :real_dims[-1]]


_SINGLE_BUFFER_WEIGHTS_OK = None  # probed once; cached


def mlp_forward(prepared, x, activation_name, p_dropout=0.0, *, block_batch=None):
    """Matches MLP.forward: hidden Linear+act (+Dropout=identity), final Linear,
    then Sigmoid. Single fused, jitted pallas_call over pre-padded params."""
    global _SINGLE_BUFFER_WEIGHTS_OK
    act = _ACT_MAP[activation_name]
    if block_batch is None:
        block_batch = _pick_block_batch(x.shape[0])
    kwargs = dict(activation=act, real_dims=prepared["real_dims"],
                  pdims=prepared["pdims"], block_batch=block_batch)

    if _SINGLE_BUFFER_WEIGHTS_OK is not False:
        try:
            out = _mlp_forward_impl(prepared["padded_wb"], x,
                                    single_buffer_weights=True, **kwargs)
            if _SINGLE_BUFFER_WEIGHTS_OK is None:
                out = jax.block_until_ready(out)   # probe once, then trust cache
            _SINGLE_BUFFER_WEIGHTS_OK = True
            return out
        except Exception:
            _SINGLE_BUFFER_WEIGHTS_OK = False      # fall back to default buffering
    return _mlp_forward_impl(prepared["padded_wb"], x,
                             single_buffer_weights=False, **kwargs)


def init_mlp_params(key, input_size, output_size, hidden_layer_sizes):
    """Deterministic nn.Linear-style init: U(-1/sqrt(fan_in), 1/sqrt(fan_in)).
    Weights stored (in_features, out_features) so the kernel computes y = x@W + b."""
    sizes = [input_size] + list(hidden_layer_sizes) + [output_size]
    params = []
    for d_in, d_out in zip(sizes[:-1], sizes[1:]):
        key, kw, kb = jax.random.split(key, 3)
        bound = 1.0 / jnp.sqrt(float(d_in))
        w = jax.random.uniform(kw, (d_in, d_out), jnp.float32, -bound, bound)
        b = jax.random.uniform(kb, (d_out,), jnp.float32, -bound, bound)
        params.append((w, b))
    return params


# ---------------------------------- main ----------------------------------- #
if __name__ == "__main__":
    batch = 8
    input_size = 32
    hidden_layer_sizes = [64, 32]
    output_size = 8
    activation_name = "Relu"
    p_dropout = 0.1  # identity at inference

    key = jax.random.PRNGKey(0)
    key, kx = jax.random.split(key)
    x = jax.random.normal(kx, (batch, input_size), dtype=jnp.float32)
    params = init_mlp_params(key, input_size, output_size, hidden_layer_sizes)

    # pure-JAX reference (ReLU hidden layers + final sigmoid)
    def ref_forward(params, x):
        h = x
        for w, b in params[:-1]:
            h = jnp.maximum(h @ w + b, 0.0)
        w, b = params[-1]
        return jax.nn.sigmoid(h @ w + b)

    ref = ref_forward(params, x)

    # f32 weights: tight reference check
    prepared_f32 = prepare_params(params, param_dtype=jnp.float32)
    out = jax.block_until_ready(mlp_forward(prepared_f32, x, activation_name, p_dropout))
    assert out.shape == (batch, output_size)
    assert bool(jnp.all(out >= 0.0)) and bool(jnp.all(out <= 1.0))
    assert bool(jnp.allclose(out, ref, atol=1e-5, rtol=1e-5))

    # bf16 weights (v6e/v7x MXU-friendly path): looser tolerance
    prepared_bf16 = prepare_params(params, param_dtype=jnp.bfloat16)
    out_bf16 = jax.block_until_ready(
        mlp_forward(prepared_bf16, x, activation_name, p_dropout))
    assert out_bf16.shape == (batch, output_size)
    assert bool(jnp.allclose(out_bf16, ref, atol=3e-2, rtol=3e-2))

    print("KERNEL_OK")
</pallas_src>

<mosaic_0001>
module attributes {stable_mosaic.version = 11 : i64} {
  func.func @_mlp_fused_kernel(%arg0: i32, %arg1: memref<8x32xf32, #tpu.memory_space<vmem>>, %arg2: memref<32x128xf32, #tpu.memory_space<vmem>>, %arg3: memref<1x128xf32, #tpu.memory_space<vmem>>, %arg4: memref<128x128xf32, #tpu.memory_space<vmem>>, %arg5: memref<1x128xf32, #tpu.memory_space<vmem>>, %arg6: memref<128x128xf32, #tpu.memory_space<vmem>>, %arg7: memref<1x128xf32, #tpu.memory_space<vmem>>, %arg8: memref<8x128xf32, #tpu.memory_space<vmem>>) attributes {dimension_semantics = [#tpu.dimension_semantics<parallel>], iteration_bounds = array<i64: 1>, scalar_prefetch = 0 : i64, scratch_operands = 0 : i64, tpu.core_type = #tpu.core_type<tc>, window_params = [{transform_indices = @transform_0, window_bounds = array<i64: 8, 32>}, {pipeline_mode = #tpu.pipeline_mode<synchronous>, transform_indices = @transform_1, window_bounds = array<i64: 32, 128>}, {pipeline_mode = #tpu.pipeline_mode<synchronous>, transform_indices = @transform_2, window_bounds = array<i64: 1, 128>}, {pipeline_mode = #tpu.pipeline_mode<synchronous>, transform_indices = @transform_3, window_bounds = array<i64: 128, 128>}, {pipeline_mode = #tpu.pipeline_mode<synchronous>, transform_indices = @transform_4, window_bounds = array<i64: 1, 128>}, {pipeline_mode = #tpu.pipeline_mode<synchronous>, transform_indices = @transform_5, window_bounds = array<i64: 128, 128>}, {pipeline_mode = #tpu.pipeline_mode<synchronous>, transform_indices = @transform_6, window_bounds = array<i64: 1, 128>}, {transform_indices = @transform_7, window_bounds = array<i64: 8, 128>}]} {
    %c0 = arith.constant 0 : index
    %c0_0 = arith.constant 0 : index
    %0 = vector.load %arg1[%c0, %c0_0] : memref<8x32xf32, #tpu.memory_space<vmem>>, vector<8x32xf32>
    %c0_1 = arith.constant 0 : index
    %c0_2 = arith.constant 0 : index
    %1 = vector.load %arg2[%c0_1, %c0_2] : memref<32x128xf32, #tpu.memory_space<vmem>>, vector<32x128xf32>
    %cst = arith.constant dense<0.000000e+00> : vector<8x128xf32>
    %2 = tpu.matmul %0, %1, %cst {dimension_numbers = #tpu.dot_dimension_numbers<[1], [0], [0], [1], [0, 0, 1, 1], [], []>} : vector<8x32xf32>, vector<32x128xf32>, vector<8x128xf32> -> vector<8x128xf32>
    %c0_3 = arith.constant 0 : index
    %c0_4 = arith.constant 0 : index
    %3 = vector.load %arg3[%c0_3, %c0_4] : memref<1x128xf32, #tpu.memory_space<vmem>>, vector<1x128xf32>
    %4 = vector.broadcast %3 : vector<1x128xf32> to vector<8x128xf32>
    %5 = arith.addf %2, %4 : vector<8x128xf32>
    %cst_5 = arith.constant 0.000000e+00 : f32
    %6 = vector.broadcast %cst_5 : f32 to vector<8x128xf32>
    %7 = arith.maximumf %5, %6 : vector<8x128xf32>
    %c0_6 = arith.constant 0 : index
    %c0_7 = arith.constant 0 : index
    %8 = vector.load %arg4[%c0_6, %c0_7] : memref<128x128xf32, #tpu.memory_space<vmem>>, vector<128x128xf32>
    %cst_8 = arith.constant dense<0.000000e+00> : vector<8x128xf32>
    %9 = tpu.matmul %7, %8, %cst_8 {dimension_numbers = #tpu.dot_dimension_numbers<[1], [0], [0], [1], [0, 0, 1, 1], [], []>} : vector<8x128xf32>, vector<128x128xf32>, vector<8x128xf32> -> vector<8x128xf32>
    %c0_9 = arith.constant 0 : index
    %c0_10 = arith.constant 0 : index
    %10 = vector.load %arg5[%c0_9, %c0_10] : memref<1x128xf32, #tpu.memory_space<vmem>>, vector<1x128xf32>
    %11 = vector.broadcast %10 : vector<1x128xf32> to vector<8x128xf32>
    %12 = arith.addf %9, %11 : vector<8x128xf32>
    %cst_11 = arith.constant 0.000000e+00 : f32
    %13 = vector.broadcast %cst_11 : f32 to vector<8x128xf32>
    %14 = arith.maximumf %12, %13 : vector<8x128xf32>
    %c0_12 = arith.constant 0 : index
    %c0_13 = arith.constant 0 : index
    %15 = vector.load %arg6[%c0_12, %c0_13] : memref<128x128xf32, #tpu.memory_space<vmem>>, vector<128x128xf32>
    %cst_14 = arith.constant dense<0.000000e+00> : vector<8x128xf32>
    %16 = tpu.matmul %14, %15, %cst_14 {dimension_numbers = #tpu.dot_dimension_numbers<[1], [0], [0], [1], [0, 0, 1, 1], [], []>} : vector<8x128xf32>, vector<128x128xf32>, vector<8x128xf32> -> vector<8x128xf32>
    %c0_15 = arith.constant 0 : index
    %c0_16 = arith.constant 0 : index
    %17 = vector.load %arg7[%c0_15, %c0_16] : memref<1x128xf32, #tpu.memory_space<vmem>>, vector<1x128xf32>
    %18 = vector.broadcast %17 : vector<1x128xf32> to vector<8x128xf32>
    %19 = arith.addf %16, %18 : vector<8x128xf32>
    %20 = arith.negf %19 : vector<8x128xf32>
    %21 = math.exp %20 : vector<8x128xf32>
    %cst_17 = arith.constant 1.000000e+00 : f32
    %22 = vector.broadcast %cst_17 : f32 to vector<8x128xf32>
    %23 = arith.addf %22, %21 : vector<8x128xf32>
    %24 = arith.divf %22, %23 : vector<8x128xf32>
    %c0_18 = arith.constant 0 : index
    %c0_19 = arith.constant 0 : index
    %25 = vector.load %arg8[%c0_18, %c0_19] : memref<8x128xf32, #tpu.memory_space<vmem>>, vector<8x128xf32>
    tpu.vector_store %arg8[%c0_18, %c0_19], %24 {strides = array<i32>} : memref<8x128xf32, #tpu.memory_space<vmem>>, vector<8x128xf32>,
    return
  }
  func.func @transform_0(%arg0: i32) -> (i32, i32) {
    %c0_i32 = arith.constant 0 : i32
    %c0_i32_0 = arith.constant 0 : i32
    return %arg0, %c0_i32 : i32, i32
  }
  func.func @transform_1(%arg0: i32) -> (i32, i32) {
    %c0_i32 = arith.constant 0 : i32
    %c0_i32_0 = arith.constant 0 : i32
    %c0_i32_1 = arith.constant 0 : i32
    return %c0_i32, %c0_i32_0 : i32, i32
  }
  func.func @transform_2(%arg0: i32) -> (i32, i32) {
    %c0_i32 = arith.constant 0 : i32
    %c0_i32_0 = arith.constant 0 : i32
    %c0_i32_1 = arith.constant 0 : i32
    return %c0_i32, %c0_i32_0 : i32, i32
  }
  func.func @transform_3(%arg0: i32) -> (i32, i32) {
    %c0_i32 = arith.constant 0 : i32
    %c0_i32_0 = arith.constant 0 : i32
    %c0_i32_1 = arith.constant 0 : i32
    return %c0_i32, %c0_i32_0 : i32, i32
  }
  func.func @transform_4(%arg0: i32) -> (i32, i32) {
    %c0_i32 = arith.constant 0 : i32
    %c0_i32_0 = arith.constant 0 : i32
    %c0_i32_1 = arith.constant 0 : i32
    return %c0_i32, %c0_i32_0 : i32, i32
  }
  func.func @transform_5(%arg0: i32) -> (i32, i32) {
    %c0_i32 = arith.constant 0 : i32
    %c0_i32_0 = arith.constant 0 : i32
    %c0_i32_1 = arith.constant 0 : i32
    return %c0_i32, %c0_i32_0 : i32, i32
  }
  func.func @transform_6(%arg0: i32) -> (i32, i32) {
    %c0_i32 = arith.constant 0 : i32
    %c0_i32_0 = arith.constant 0 : i32
    %c0_i32_1 = arith.constant 0 : i32
    return %c0_i32, %c0_i32_0 : i32, i32
  }
  func.func @transform_7(%arg0: i32) -> (i32, i32) {
    %c0_i32 = arith.constant 0 : i32
    %c0_i32_0 = arith.constant 0 : i32
    return %arg0, %c0_i32 : i32, i32
  }
}

module attributes {stable_mosaic.version = 11 : i64} {
  func.func @_mlp_fused_kernel(%arg0: i32, %arg1: memref<8x32xf32, #tpu.memory_space<vmem>>, %arg2: memref<32x128xf32, #tpu.memory_space<vmem>>, %arg3: memref<1x128xf32, #tpu.memory_space<vmem>>, %arg4: memref<128x128xf32, #tpu.memory_space<vmem>>, %arg5: memref<1x128xf32, #tpu.memory_space<vmem>>, %arg6: memref<128x128xf32, #tpu.memory_space<vmem>>, %arg7: memref<1x128xf32, #tpu.memory_space<vmem>>, %arg8: memref<8x128xf32, #tpu.memory_space<vmem>>) attributes {dimension_semantics = [#tpu.dimension_semantics<parallel>], iteration_bounds = array<i64: 1>, scalar_prefetch = 0 : i64, scratch_operands = 0 : i64, tpu.core_type = #tpu.core_type<tc>, window_params = [{transform_indices = @transform_0, window_bounds = array<i64: 8, 32>}, {pipeline_mode = #tpu.pipeline_mode<synchronous>, transform_indices = @transform_1, window_bounds = array<i64: 32, 128>}, {pipeline_mode = #tpu.pipeline_mode<synchronous>, transform_indices = @transform_2, window_bounds = array<i64: 1, 128>}, {pipeline_mode = #tpu.pipeline_mode<synchronous>, transform_indices = @transform_3, window_bounds = array<i64: 128, 128>}, {pipeline_mode = #tpu.pipeline_mode<synchronous>, transform_indices = @transform_4, window_bounds = array<i64: 1, 128>}, {pipeline_mode = #tpu.pipeline_mode<synchronous>, transform_indices = @transform_5, window_bounds = array<i64: 128, 128>}, {pipeline_mode = #tpu.pipeline_mode<synchronous>, transform_indices = @transform_6, window_bounds = array<i64: 1, 128>}, {transform_indices = @transform_7, window_bounds = array<i64: 8, 128>}]} {
    %c0 = arith.constant 0 : index
    %c0_0 = arith.constant 0 : index
    %0 = vector.load %arg1[%c0, %c0_0] : memref<8x32xf32, #tpu.memory_space<vmem>>, vector<8x32xf32>
    %c0_1 = arith.constant 0 : index
    %c0_2 = arith.constant 0 : index
    %1 = vector.load %arg2[%c0_1, %c0_2] : memref<32x128xf32, #tpu.memory_space<vmem>>, vector<32x128xf32>
    %cst = arith.constant dense<0.000000e+00> : vector<8x128xf32>
    %2 = tpu.matmul %0, %1, %cst {dimension_numbers = #tpu.dot_dimension_numbers<[1], [0], [0], [1], [0, 0, 1, 1], [], []>} : vector<8x32xf32>, vector<32x128xf32>, vector<8x128xf32> -> vector<8x128xf32>
    %c0_3 = arith.constant 0 : index
    %c0_4 = arith.constant 0 : index
    %3 = vector.load %arg3[%c0_3, %c0_4] : memref<1x128xf32, #tpu.memory_space<vmem>>, vector<1x128xf32>
    %4 = vector.broadcast %3 : vector<1x128xf32> to vector<8x128xf32>
    %5 = arith.addf %2, %4 : vector<8x128xf32>
    %cst_5 = arith.constant 0.000000e+00 : f32
    %6 = vector.broadcast %cst_5 : f32 to vector<8x128xf32>
    %7 = arith.maximumf %5, %6 : vector<8x128xf32>
    %c0_6 = arith.constant 0 : index
    %c0_7 = arith.constant 0 : index
    %8 = vector.load %arg4[%c0_6, %c0_7] : memref<128x128xf32, #tpu.memory_space<vmem>>, vector<128x128xf32>
    %cst_8 = arith.constant dense<0.000000e+00> : vector<8x128xf32>
    %9 = tpu.matmul %7, %8, %cst_8 {dimension_numbers = #tpu.dot_dimension_numbers<[1], [0], [0], [1], [0, 0, 1, 1], [], []>} : vector<8x128xf32>, vector<128x128xf32>, vector<8x128xf32> -> vector<8x128xf32>
    %c0_9 = arith.constant 0 : index
    %c0_10 = arith.constant 0 : index
    %10 = vector.load %arg5[%c0_9, %c0_10] : memref<1x128xf32, #tpu.memory_space<vmem>>, vector<1x128xf32>
    %11 = vector.broadcast %10 : vector<1x128xf32> to vector<8x128xf32>
    %12 = arith.addf %9, %11 : vector<8x128xf32>
    %cst_11 = arith.constant 0.000000e+00 : f32
    %13 = vector.broadcast %cst_11 : f32 to vector<8x128xf32>
    %14 = arith.maximumf %12, %13 : vector<8x128xf32>
    %c0_12 = arith.constant 0 : index
    %c0_13 = arith.constant 0 : index
    %15 = vector.load %arg6[%c0_12, %c0_13] : memref<128x128xf32, #tpu.memory_space<vmem>>, vector<128x128xf32>
    %cst_14 = arith.constant dense<0.000000e+00> : vector<8x128xf32>
    %16 = tpu.matmul %14, %15, %cst_14 {dimension_numbers = #tpu.dot_dimension_numbers<[1], [0], [0], [1], [0, 0, 1, 1], [], []>} : vector<8x128xf32>, vector<128x128xf32>, vector<8x128xf32> -> vector<8x128xf32>
    %c0_15 = arith.constant 0 : index
    %c0_16 = arith.constant 0 : index
    %17 = vector.load %arg7[%c0_15, %c0_16] : memref<1x128xf32, #tpu.memory_space<vmem>>, vector<1x128xf32>
    %18 = vector.broadcast %17 : vector<1x128xf32> to vector<8x128xf32>
    %19 = arith.addf %16, %18 : vector<8x128xf32>
    %20 = arith.negf %19 : vector<8x128xf32>
    %21 = math.exp %20 : vector<8x128xf32>
    %cst_17 = arith.constant 1.000000e+00 : f32
    %22 = vector.broadcast %cst_17 : f32 to vector<8x128xf32>
    %23 = arith.addf %22, %21 : vector<8x128xf32>
    %24 = arith.divf %22, %23 : vector<8x128xf32>
    %c0_18 = arith.constant 0 : index
    %c0_19 = arith.constant 0 : index
    %25 = vector.load %arg8[%c0_18, %c0_19] : memref<8x128xf32, #tpu.memory_space<vmem>>, vector<8x128xf32>
    tpu.vector_store %arg8[%c0_18, %c0_19], %24 {strides = array<i32>} : memref<8x128xf32, #tpu.memory_space<vmem>>, vector<8x128xf32>,
    return
  }
  func.func @transform_0(%arg0: i32) -> (i32, i32) {
    %c0_i32 = arith.constant 0 : i32
    %c0_i32_0 = arith.constant 0 : i32
    return %arg0, %c0_i32 : i32, i32
  }
  func.func @transform_1(%arg0: i32) -> (i32, i32) {
    %c0_i32 = arith.constant 0 : i32
    %c0_i32_0 = arith.constant 0 : i32
    %c0_i32_1 = arith.constant 0 : i32
    return %c0_i32, %c0_i32_0 : i32, i32
  }
  func.func @transform_2(%arg0: i32) -> (i32, i32) {
    %c0_i32 = arith.constant 0 : i32
    %c0_i32_0 = arith.constant 0 : i32
    %c0_i32_1 = arith.constant 0 : i32
    return %c0_i32, %c0_i32_0 : i32, i32
  }
  func.func @transform_3(%arg0: i32) -> (i32, i32) {
    %c0_i32 = arith.constant 0 : i32
    %c0_i32_0 = arith.constant 0 : i32
    %c0_i32_1 = arith.constant 0 : i32
    return %c0_i32, %c0_i32_0 : i32, i32
  }
  func.func @transform_4(%arg0: i32) -> (i32, i32) {
    %c0_i32 = arith.constant 0 : i32
    %c0_i32_0 = arith.constant 0 : i32
    %c0_i32_1 = arith.constant 0 : i32
    return %c0_i32, %c0_i32_0 : i32, i32
  }
  func.func @transform_5(%arg0: i32) -> (i32, i32) {
    %c0_i32 = arith.constant 0 : i32
    %c0_i32_0 = arith.constant 0 : i32
    %c0_i32_1 = arith.constant 0 : i32
    return %c0_i32, %c0_i32_0 : i32, i32
  }
  func.func @transform_6(%arg0: i32) -> (i32, i32) {
    %c0_i32 = arith.constant 0 : i32
    %c0_i32_0 = arith.constant 0 : i32
    %c0_i32_1 = arith.constant 0 : i32
    return %c0_i32, %c0_i32_0 : i32, i32
  }
  func.func @transform_7(%arg0: i32) -> (i32, i32) {
    %c0_i32 = arith.constant 0 : i32
    %c0_i32_0 = arith.constant 0 : i32
    return %arg0, %c0_i32 : i32, i32
  }
}

</mosaic_0001>

<llo_original>
// kernel: _mlp_forward_impl.1
$region0: #{_mlp_forward_impl.1}
  #allocation0 [shape = 'u32[]', space=smem, size = 0x4, offset = 0x4, fixed_abs, tag = 'smem constant byte address 0x4 - core index']
  #allocation1 [shape = 'u32[144,128]{1,0:T(1,128)}', space=vmem, size = 0x12000, scoped, tag = 'internal scratch']
  %s0 = inlined_call_operand.vmem [shape: f32[8,32], index: 0, kind: input, shape index: {}]
  %s1 = inlined_call_operand.hbm [shape: f32[32,128], index: 1, kind: input, shape index: {}]
  %s2 = inlined_call_operand.vmem [shape: f32[1,128], index: 2, kind: input, shape index: {}]
  %s3 = inlined_call_operand.hbm [shape: f32[128,128], index: 3, kind: input, shape index: {}]
  %s4 = inlined_call_operand.vmem [shape: f32[1,128], index: 4, kind: input, shape index: {}]
  %s5 = inlined_call_operand.hbm [shape: f32[128,128], index: 5, kind: input, shape index: {}]
  %s6 = inlined_call_operand.vmem [shape: f32[1,128], index: 6, kind: input, shape index: {}]
  %s7 = inlined_call_operand.hbm [shape: f32[8,128], index: 7, kind: output, shape index: {}]
  %s8 = sld [smem:[#allocation0]]
  $region50: #{_mlp_forward_impl.1} parent=0
    _
  %s10 = ssub.s32 1, %s8
  %s11 = scalar_select 0, %s10, %s8
  $region1: #{_mlp_forward_impl.1} parent=0
    #allocation2 [shape = 'u8[16384]{0}', space=vmem, size = 0x4000, scoped, tag = 'input window, operand 1, single buffered']
    #allocation3 [shape = 's32[1]{0}', space=sflag, size = 0x4, scoped, tag = 'scoped memory for _mlp_forward_impl.1']
    #allocation4 [shape = 's32[1]{0}', space=sflag, size = 0x4, scoped, tag = 'scoped memory for _mlp_forward_impl.1']
    #allocation5 [shape = 'u8[65536]{0}', space=vmem, size = 0x10000, scoped, tag = 'input window, operand 3, single buffered']
    #allocation6 [shape = 's32[1]{0}', space=sflag, size = 0x4, scoped, tag = 'scoped memory for _mlp_forward_impl.1']
    #allocation7 [shape = 'u8[65536]{0}', space=vmem, size = 0x10000, scoped, tag = 'input window, operand 5, single buffered']
    #allocation8 [shape = 'u8[4096]{0}', space=vmem, size = 0x1000, scoped, tag = 'output window, operand 0, single buffered']
    %12 = vsyncpa [#allocation3], 0
    %13 = vsyncpa [#allocation6], 0
    %14 = vsyncpa [#allocation4], 0
    // Predicated region
    $region2: #{_mlp_forward_impl.1} parent=1 // pred_check
      _
    $region3: #{_mlp_forward_impl.1} parent=1 // pred_check_branch
      %16 = sbr.rel (0) target = $region5
    $region4: #{_mlp_forward_impl.1} parent=1 // pred_region
      _
    $region5: #{_mlp_forward_impl.1} parent=1 // pred_fallthru
      _
    // Predicated region
    $region6: #{_mlp_forward_impl.1} parent=1 // pred_check
      _
    $region7: #{_mlp_forward_impl.1} parent=1 // pred_check_branch
      %18 = sbr.rel (0) target = $region9
    $region8: #{_mlp_forward_impl.1} parent=1 // pred_region
      %s20 = ssub.s32 512, 512
      %21 = vsyncadd [#allocation3], %s20
      %s22 = sshll.u32 [#allocation2], 4
      %s23 = int_to_ptr.vmem [resolvable:$true] %s22
      %28 = dma.hbm_to_vmem [thread:$0]  %s1, 512, %s23, [#allocation3], 128, 128, 8
    $region9: #{_mlp_forward_impl.1} parent=1 // pred_fallthru
      _
    // Predicated region
    $region10: #{_mlp_forward_impl.1} parent=1 // pred_check
      _
    $region11: #{_mlp_forward_impl.1} parent=1 // pred_check_branch
      %30 = sbr.rel (0) target = $region13
    $region12: #{_mlp_forward_impl.1} parent=1 // pred_region
      _
    $region13: #{_mlp_forward_impl.1} parent=1 // pred_fallthru
      _
    // Predicated region
    $region14: #{_mlp_forward_impl.1} parent=1 // pred_check
      _
    $region15: #{_mlp_forward_impl.1} parent=1 // pred_check_branch
      %32 = sbr.rel (0) target = $region17
    $region16: #{_mlp_forward_impl.1} parent=1 // pred_region
      %s34 = ssub.s32 2048, 2048
      %35 = vsyncadd [#allocation6], %s34
      %s36 = sshll.u32 [#allocation5], 4
      %s37 = int_to_ptr.vmem [resolvable:$true] %s36
      %42 = dma.hbm_to_vmem [thread:$0]  %s3, 2048, %s37, [#allocation6], 128, 128, 8
    $region17: #{_mlp_forward_impl.1} parent=1 // pred_fallthru
      _
    // Predicated region
    $region18: #{_mlp_forward_impl.1} parent=1 // pred_check
      _
    $region19: #{_mlp_forward_impl.1} parent=1 // pred_check_branch
      %44 = sbr.rel (0) target = $region21
    $region20: #{_mlp_forward_impl.1} parent=1 // pred_region
      _
    $region21: #{_mlp_forward_impl.1} parent=1 // pred_fallthru
      _
    // Predicated region
    $region22: #{_mlp_forward_impl.1} parent=1 // pred_check
      _
    $region23: #{_mlp_forward_impl.1} parent=1 // pred_check_branch
      %46 = sbr.rel (0) target = $region25
    $region24: #{_mlp_forward_impl.1} parent=1 // pred_region
      %s48 = ssub.s32 2048, 2048
      %49 = vsyncadd [#allocation6], %s48
      %s50 = sshll.u32 [#allocation7], 4
      %s51 = int_to_ptr.vmem [resolvable:$true] %s50
      %56 = dma.hbm_to_vmem [thread:$0]  %s5, 2048, %s51, [#allocation6], 128, 128, 8
    $region25: #{_mlp_forward_impl.1} parent=1 // pred_fallthru
      _
    // Predicated region
    $region26: #{_mlp_forward_impl.1} parent=1 // pred_check
      _
    $region27: #{_mlp_forward_impl.1} parent=1 // pred_check_branch
      %58 = sbr.rel (0) target = $region29
    $region28: #{_mlp_forward_impl.1} parent=1 // pred_region
      _
    $region29: #{_mlp_forward_impl.1} parent=1 // pred_fallthru
      _
    // Predicated region
    $region30: #{_mlp_forward_impl.1} parent=1 // pred_check
      _
    $region31: #{_mlp_forward_impl.1} parent=1 // pred_check_branch
      %60 = sbr.rel (0) target = $region33
    $region32: #{_mlp_forward_impl.1} parent=1 // pred_region
      %61 = dma.done [#allocation3], 512
    $region33: #{_mlp_forward_impl.1} parent=1 // pred_fallthru
      _
    // Predicated region
    $region34: #{_mlp_forward_impl.1} parent=1 // pred_check
      _
    $region35: #{_mlp_forward_impl.1} parent=1 // pred_check_branch
      %63 = sbr.rel (0) target = $region37
    $region36: #{_mlp_forward_impl.1} parent=1 // pred_region
      %64 = dma.done [#allocation6], 2048
    $region37: #{_mlp_forward_impl.1} parent=1 // pred_fallthru
      _
    // Predicated region
    $region38: #{_mlp_forward_impl.1} parent=1 // pred_check
      _
    $region39: #{_mlp_forward_impl.1} parent=1 // pred_check_branch
      %66 = sbr.rel (0) target = $region41
    $region40: #{_mlp_forward_impl.1} parent=1 // pred_region
      %67 = dma.done [#allocation6], 2048
    $region41: #{_mlp_forward_impl.1} parent=1 // pred_fallthru
      _
    %v68 = vld [vmem:[%s0] sm:$0xff]
    %v69 = vld [vmem:[#allocation2] sm:$0xff]
    %v70 = vld [vmem:[#allocation2 + $0x8] sm:$0xff]
    %v71 = vld [vmem:[#allocation2 + $0x10] sm:$0xff]
    %v72 = vld [vmem:[#allocation2 + $0x18] sm:$0xff]
    %v73 = vld [vmem:[%s2] sm:$0x1]
    %v75 = vlaneseq
    %v76 = vshrl.u32 %v75, 7
    %v77 = vsub.s32 0, %v76
    %v78 = vrot.slane %v73, %v77
    %vm80 = vcmask 261120
    %v82 = vsel %vm80, %v68, 0
    %84 = vmatprep.subr.mxu0 0.0
    %85 = vmatpush1.msra.mxu0 %v69
    %86 = vmatprep.subr.mxu0 0.0
    %87 = vmatpush1.msra.mxu0 %v70
    %88 = vmatprep.subr.mxu0 0.0
    %89 = vmatpush1.msra.mxu0 %v71
    %90 = vmatprep.subr.mxu0 0.0
    %91 = vmatpush1.msra.mxu0 %v72
    %92 = vmatprep.subr.mxu0 0.0
    %93 = vmatpush1.msra.mxu0 0.0
    %94 = vmatprep.subr.mxu0 0.0
    %95 = vmatpush1.msra.mxu0 0.0
    %96 = vmatprep.subr.mxu0 0.0
    %97 = vmatpush1.msra.mxu0 0.0
    %98 = vmatprep.subr.mxu0 0.0
    %99 = vmatpush1.msra.mxu0 0.0
    %100 = vmatprep.subr.mxu0 0.0
    %101 = vmatpush1.msra.mxu0 0.0
    %102 = vmatprep.subr.mxu0 0.0
    %103 = vmatpush1.msra.mxu0 0.0
    %104 = vmatprep.subr.mxu0 0.0
    %105 = vmatpush1.msra.mxu0 0.0
    %106 = vmatprep.subr.mxu0 0.0
    %107 = vmatpush1.msra.mxu0 0.0
    %108 = vmatprep.subr.mxu0 0.0
    %109 = vmatpush1.msra.mxu0 0.0
    %110 = vmatprep.subr.mxu0 0.0
    %111 = vmatpush1.msra.mxu0 0.0
    %112 = vmatprep.subr.mxu0 0.0
    %113 = vmatpush1.msra.mxu0 0.0
    %114 = vmatprep.subr.mxu0 0.0
    %115 = vmatpush1.msra.mxu0 0.0
    %116 = vmatprep.subr.mxu0 0.0
    %117 = vmatpush1.msra.mxu0 0.0
    %118 = vmatprep.subr.mxu0 0.0
    %119 = vmatpush1.msra.mxu0 0.0
    %120 = vmatprep.subr.mxu0 0.0
    %121 = vmatpush1.msra.mxu0 0.0
    %122 = vmatprep.subr.mxu0 0.0
    %123 = vmatpush1.msra.mxu0 0.0
    %124 = vmatprep.subr.mxu0 0.0
    %125 = vmatpush1.msra.mxu0 0.0
    %126 = vmatprep.subr.mxu0 0.0
    %127 = vmatpush1.msra.mxu0 0.0
    %128 = vmatprep.subr.mxu0 0.0
    %129 = vmatpush1.msra.mxu0 0.0
    %130 = vmatprep.subr.mxu0 0.0
    %131 = vmatpush1.msra.mxu0 0.0
    %132 = vmatprep.subr.mxu0 0.0
    %133 = vmatpush1.msra.mxu0 0.0
    %134 = vmatprep.subr.mxu0 0.0
    %135 = vmatpush1.msra.mxu0 0.0
    %136 = vmatprep.subr.mxu0 0.0
    %137 = vmatpush1.msra.mxu0 0.0
    %138 = vmatprep.subr.mxu0 0.0
    %139 = vmatpush1.msra.mxu0 0.0
    %140 = vmatprep.subr.mxu0 0.0
    %141 = vmatpush1.msra.mxu0 0.0
    %142 = vmatprep.subr.mxu0 0.0
    %143 = vmatpush1.msra.mxu0 0.0
    %144 = vmatprep.subr.mxu0 0.0
    %145 = vmatpush1.msra.mxu0 0.0
    %146 = vmatprep.subr.mxu0 0.0
    %147 = vmatpush1.msra.mxu0 0.0
    %148 = vmatprep.mubr.f32.mxu0 0.0
    %149 = vmatmul.mubr.f32.gmra.mrb[0].mxu0 %v82
    %v150 = vpop.f32.mrb[0].mxu0
    %v151 = vadd.f32 %v78, %v150
    %v152 = vpop.f32.mrb[0].mxu0
    %153 = vdwg.mxu0
    %v154 = vmax.f32 %v151, 0.0
    %v155 = vld [vmem:[#allocation5] sm:$0xff]
    %v156 = vld [vmem:[#allocation5 + $0x8] sm:$0xff]
    %v157 = vld [vmem:[#allocation5 + $0x10] sm:$0xff]
    %v158 = vld [vmem:[#allocation5 + $0x18] sm:$0xff]
    %v159 = vld [vmem:[#allocation5 + $0x20] sm:$0xff]
    %v160 = vld [vmem:[#allocation5 + $0x28] sm:$0xff]
    %v161 = vld [vmem:[#allocation5 + $0x30] sm:$0xff]
    %v162 = vld [vmem:[#allocation5 + $0x38] sm:$0xff]
    %v163 = vld [vmem:[#allocation5 + $0x40] sm:$0xff]
    %v164 = vld [vmem:[#allocation5 + $0x48] sm:$0xff]
    %v165 = vld [vmem:[#allocation5 + $0x50] sm:$0xff]
    %v166 = vld [vmem:[#allocation5 + $0x58] sm:$0xff]
    %v167 = vld [vmem:[#allocation5 + $0x60] sm:$0xff]
    %v168 = vld [vmem:[#allocation5 + $0x68] sm:$0xff]
    %v169 = vld [vmem:[#allocation5 + $0x70] sm:$0xff]
    %v170 = vld [vmem:[#allocation5 + $0x78] sm:$0xff]
    %v171 = vld [vmem:[%s4] sm:$0x1]
    %v173 = vlaneseq
    %v174 = vshrl.u32 %v173, 7
    %v175 = vsub.s32 0, %v174
    %v176 = vrot.slane %v171, %v175
    %178 = vmatprep.subr.mxu0 0.0
    %179 = vmatpush1.msra.mxu0 %v155
    %180 = vmatprep.subr.mxu0 0.0
    %181 = vmatpush1.msra.mxu0 %v156
    %182 = vmatprep.subr.mxu0 0.0
    %183 = vmatpush1.msra.mxu0 %v157
    %184 = vmatprep.subr.mxu0 0.0
    %185 = vmatpush1.msra.mxu0 %v158
    %186 = vmatprep.subr.mxu0 0.0
    %187 = vmatpush1.msra.mxu0 %v159
    %188 = vmatprep.subr.mxu0 0.0
    %189 = vmatpush1.msra.mxu0 %v160
    %190 = vmatprep.subr.mxu0 0.0
    %191 = vmatpush1.msra.mxu0 %v161
    %192 = vmatprep.subr.mxu0 0.0
    %193 = vmatpush1.msra.mxu0 %v162
    %194 = vmatprep.subr.mxu0 0.0
    %195 = vmatpush1.msra.mxu0 %v163
    %196 = vmatprep.subr.mxu0 0.0
    %197 = vmatpush1.msra.mxu0 %v164
    %198 = vmatprep.subr.mxu0 0.0
    %199 = vmatpush1.msra.mxu0 %v165
    %200 = vmatprep.subr.mxu0 0.0
    %201 = vmatpush1.msra.mxu0 %v166
    %202 = vmatprep.subr.mxu0 0.0
    %203 = vmatpush1.msra.mxu0 %v167
    %204 = vmatprep.subr.mxu0 0.0
    %205 = vmatpush1.msra.mxu0 %v168
    %206 = vmatprep.subr.mxu0 0.0
    %207 = vmatpush1.msra.mxu0 %v169
    %208 = vmatprep.subr.mxu0 0.0
    %209 = vmatpush1.msra.mxu0 %v170
    %210 = vmatprep.subr.mxu0 0.0
    %211 = vmatpush1.msra.mxu0 0.0
    %212 = vmatprep.subr.mxu0 0.0
    %213 = vmatpush1.msra.mxu0 0.0
    %214 = vmatprep.subr.mxu0 0.0
    %215 = vmatpush1.msra.mxu0 0.0
    %216 = vmatprep.subr.mxu0 0.0
    %217 = vmatpush1.msra.mxu0 0.0
    %218 = vmatprep.subr.mxu0 0.0
    %219 = vmatpush1.msra.mxu0 0.0
    %220 = vmatprep.subr.mxu0 0.0
    %221 = vmatpush1.msra.mxu0 0.0
    %222 = vmatprep.subr.mxu0 0.0
    %223 = vmatpush1.msra.mxu0 0.0
    %224 = vmatprep.subr.mxu0 0.0
    %225 = vmatpush1.msra.mxu0 0.0
    %226 = vmatprep.subr.mxu0 0.0
    %227 = vmatpush1.msra.mxu0 0.0
    %228 = vmatprep.subr.mxu0 0.0
    %229 = vmatpush1.msra.mxu0 0.0
    %230 = vmatprep.subr.mxu0 0.0
    %231 = vmatpush1.msra.mxu0 0.0
    %232 = vmatprep.subr.mxu0 0.0
    %233 = vmatpush1.msra.mxu0 0.0
    %234 = vmatprep.subr.mxu0 0.0
    %235 = vmatpush1.msra.mxu0 0.0
    %236 = vmatprep.subr.mxu0 0.0
    %237 = vmatpush1.msra.mxu0 0.0
    %238 = vmatprep.subr.mxu0 0.0
    %239 = vmatpush1.msra.mxu0 0.0
    %240 = vmatprep.subr.mxu0 0.0
    %241 = vmatpush1.msra.mxu0 0.0
    %242 = vmatprep.mubr.f32.mxu0 0.0
    %243 = vmatmul.mubr.f32.gmra.mrb[0].mxu0 %v154
    %v244 = vpop.f32.mrb[0].mxu0
    %v245 = vadd.f32 %v176, %v244
    %v246 = vpop.f32.mrb[0].mxu0
    %247 = vdwg.mxu0
    %v248 = vmax.f32 %v245, 0.0
    %v249 = vld [vmem:[#allocation7] sm:$0xff]
    %v250 = vld [vmem:[#allocation7 + $0x8] sm:$0xff]
    %v251 = vld [vmem:[#allocation7 + $0x10] sm:$0xff]
    %v252 = vld [vmem:[#allocation7 + $0x18] sm:$0xff]
    %v253 = vld [vmem:[#allocation7 + $0x20] sm:$0xff]
    %v254 = vld [vmem:[#allocation7 + $0x28] sm:$0xff]
    %v255 = vld [vmem:[#allocation7 + $0x30] sm:$0xff]
    %v256 = vld [vmem:[#allocation7 + $0x38] sm:$0xff]
    %v257 = vld [vmem:[#allocation7 + $0x40] sm:$0xff]
    %v258 = vld [vmem:[#allocation7 + $0x48] sm:$0xff]
    %v259 = vld [vmem:[#allocation7 + $0x50] sm:$0xff]
    %v260 = vld [vmem:[#allocation7 + $0x58] sm:$0xff]
    %v261 = vld [vmem:[#allocation7 + $0x60] sm:$0xff]
    %v262 = vld [vmem:[#allocation7 + $0x68] sm:$0xff]
    %v263 = vld [vmem:[#allocation7 + $0x70] sm:$0xff]
    %v264 = vld [vmem:[#allocation7 + $0x78] sm:$0xff]
    %v265 = vld [vmem:[%s6] sm:$0x1]
    %v267 = vlaneseq
    %v268 = vshrl.u32 %v267, 7
    %v269 = vsub.s32 0, %v268
    %v270 = vrot.slane %v265, %v269
    %272 = vmatprep.subr.mxu0 0.0
    %273 = vmatpush1.msra.mxu0 %v249
    %274 = vmatprep.subr.mxu0 0.0
    %275 = vmatpush1.msra.mxu0 %v250
    %276 = vmatprep.subr.mxu0 0.0
    %277 = vmatpush1.msra.mxu0 %v251
    %278 = vmatprep.subr.mxu0 0.0
    %279 = vmatpush1.msra.mxu0 %v252
    %280 = vmatprep.subr.mxu0 0.0
    %281 = vmatpush1.msra.mxu0 %v253
    %282 = vmatprep.subr.mxu0 0.0
    %283 = vmatpush1.msra.mxu0 %v254
    %284 = vmatprep.subr.mxu0 0.0
    %285 = vmatpush1.msra.mxu0 %v255
    %286 = vmatprep.subr.mxu0 0.0
    %287 = vmatpush1.msra.mxu0 %v256
    %288 = vmatprep.subr.mxu0 0.0
    %289 = vmatpush1.msra.mxu0 %v257
    %290 = vmatprep.subr.mxu0 0.0
    %291 = vmatpush1.msra.mxu0 %v258
    %292 = vmatprep.subr.mxu0 0.0
    %293 = vmatpush1.msra.mxu0 %v259
    %294 = vmatprep.subr.mxu0 0.0
    %295 = vmatpush1.msra.mxu0 %v260
    %296 = vmatprep.subr.mxu0 0.0
    %297 = vmatpush1.msra.mxu0 %v261
    %298 = vmatprep.subr.mxu0 0.0
    %299 = vmatpush1.msra.mxu0 %v262
    %300 = vmatprep.subr.mxu0 0.0
    %301 = vmatpush1.msra.mxu0 %v263
    %302 = vmatprep.subr.mxu0 0.0
    %303 = vmatpush1.msra.mxu0 %v264
    %304 = vmatprep.subr.mxu0 0.0
    %305 = vmatpush1.msra.mxu0 0.0
    %306 = vmatprep.subr.mxu0 0.0
    %307 = vmatpush1.msra.mxu0 0.0
    %308 = vmatprep.subr.mxu0 0.0
    %309 = vmatpush1.msra.mxu0 0.0
    %310 = vmatprep.subr.mxu0 0.0
    %311 = vmatpush1.msra.mxu0 0.0
    %312 = vmatprep.subr.mxu0 0.0
    %313 = vmatpush1.msra.mxu0 0.0
    %314 = vmatprep.subr.mxu0 0.0
    %315 = vmatpush1.msra.mxu0 0.0
    %316 = vmatprep.subr.mxu0 0.0
    %317 = vmatpush1.msra.mxu0 0.0
    %318 = vmatprep.subr.mxu0 0.0
    %319 = vmatpush1.msra.mxu0 0.0
    %320 = vmatprep.subr.mxu0 0.0
    %321 = vmatpush1.msra.mxu0 0.0
    %322 = vmatprep.subr.mxu0 0.0
    %323 = vmatpush1.msra.mxu0 0.0
    %324 = vmatprep.subr.mxu0 0.0
    %325 = vmatpush1.msra.mxu0 0.0
    %326 = vmatprep.subr.mxu0 0.0
    %327 = vmatpush1.msra.mxu0 0.0
    %328 = vmatprep.subr.mxu0 0.0
    %329 = vmatpush1.msra.mxu0 0.0
    %330 = vmatprep.subr.mxu0 0.0
    %331 = vmatpush1.msra.mxu0 0.0
    %332 = vmatprep.subr.mxu0 0.0
    %333 = vmatpush1.msra.mxu0 0.0
    %334 = vmatprep.subr.mxu0 0.0
    %335 = vmatpush1.msra.mxu0 0.0
    %336 = vmatprep.mubr.f32.mxu0 0.0
    %337 = vmatmul.mubr.f32.gmra.mrb[0].mxu0 %v248
    %v338 = vpop.f32.mrb[0].mxu0
    %v339 = vadd.f32 %v270, %v338
    %v340 = vpop.f32.mrb[0].mxu0
    %341 = vdwg.mxu0
    %v342 = vxor.u32 %v339, 2147483648
    %v343 = vmul.f32 %v342, 1.442695
    %v344 = vpow.pop %v343
    %v345 = vadd.f32 %v344, 1.0
    %v346 = vrcp.pop %v345
    %v347 = vmul.f32 1.0, %v346
    %348 = vst [vmem:[#allocation8] sm:$0xff] %v347
    // Predicated region
    $region42: #{_mlp_forward_impl.1} parent=1 // pred_check
      _
    $region43: #{_mlp_forward_impl.1} parent=1 // pred_check_branch
      %350 = sbr.rel (0) target = $region45
    $region44: #{_mlp_forward_impl.1} parent=1 // pred_region
      %s352 = ssub.s32 128, 128
      %353 = vsyncadd [#allocation4], %s352
      %s355 = sshll.u32 [#allocation8], 4
      %s356 = int_to_ptr.vmem [resolvable:$true] %s355
      %358 = dma.vmem_to_hbm [thread:$0]  %s356, 128, %s7, [#allocation4]
    $region45: #{_mlp_forward_impl.1} parent=1 // pred_fallthru
      _
    // Predicated region
    $region46: #{_mlp_forward_impl.1} parent=1 // pred_check
      _
    $region47: #{_mlp_forward_impl.1} parent=1 // pred_check_branch
      %360 = sbr.rel (0) target = $region49
    $region48: #{_mlp_forward_impl.1} parent=1 // pred_region
      %361 = dma.done [#allocation4], 128
    $region49: #{_mlp_forward_impl.1} parent=1 // pred_fallthru
      _
    %362 = vsyncpa [#allocation3], 1
    %363 = vsyncpa [#allocation6], 1
    %364 = vsyncpa [#allocation4], 1

// kernel: _mlp_forward_impl.1
$region0: #{_mlp_forward_impl.1}
  #allocation0 [shape = 'u32[]', space=smem, size = 0x4, offset = 0x4, fixed_abs, tag = 'smem constant byte address 0x4 - core index']
  #allocation1 [shape = 'u32[144,128]{1,0:T(1,128)}', space=vmem, size = 0x12000, scoped, tag = 'internal scratch']
  %s0 = inlined_call_operand.vmem [shape: f32[8,32], index: 0, kind: input, shape index: {}]
  %s1 = inlined_call_operand.hbm [shape: f32[32,128], index: 1, kind: input, shape index: {}]
  %s2 = inlined_call_operand.vmem [shape: f32[1,128], index: 2, kind: input, shape index: {}]
  %s3 = inlined_call_operand.hbm [shape: f32[128,128], index: 3, kind: input, shape index: {}]
  %s4 = inlined_call_operand.vmem [shape: f32[1,128], index: 4, kind: input, shape index: {}]
  %s5 = inlined_call_operand.hbm [shape: f32[128,128], index: 5, kind: input, shape index: {}]
  %s6 = inlined_call_operand.vmem [shape: f32[1,128], index: 6, kind: input, shape index: {}]
  %s7 = inlined_call_operand.hbm [shape: f32[8,128], index: 7, kind: output, shape index: {}]
  %s8 = sld [smem:[#allocation0]]
  $region50: #{_mlp_forward_impl.1} parent=0
    _
  %s10 = ssub.s32 1, %s8
  %s11 = scalar_select 0, %s10, %s8
  $region1: #{_mlp_forward_impl.1} parent=0
    #allocation2 [shape = 'u8[16384]{0}', space=vmem, size = 0x4000, scoped, tag = 'input window, operand 1, single buffered']
    #allocation3 [shape = 's32[1]{0}', space=sflag, size = 0x4, scoped, tag = 'scoped memory for _mlp_forward_impl.1']
    #allocation4 [shape = 's32[1]{0}', space=sflag, size = 0x4, scoped, tag = 'scoped memory for _mlp_forward_impl.1']
    #allocation5 [shape = 'u8[65536]{0}', space=vmem, size = 0x10000, scoped, tag = 'input window, operand 3, single buffered']
    #allocation6 [shape = 's32[1]{0}', space=sflag, size = 0x4, scoped, tag = 'scoped memory for _mlp_forward_impl.1']
    #allocation7 [shape = 'u8[65536]{0}', space=vmem, size = 0x10000, scoped, tag = 'input window, operand 5, single buffered']
    #allocation8 [shape = 'u8[4096]{0}', space=vmem, size = 0x1000, scoped, tag = 'output window, operand 0, single buffered']
    %12 = vsyncpa [#allocation3], 0
    %13 = vsyncpa [#allocation6], 0
    %14 = vsyncpa [#allocation4], 0
    // Predicated region
    $region2: #{_mlp_forward_impl.1} parent=1 // pred_check
      _
    $region3: #{_mlp_forward_impl.1} parent=1 // pred_check_branch
      %16 = sbr.rel (0) target = $region5
    $region4: #{_mlp_forward_impl.1} parent=1 // pred_region
      _
    $region5: #{_mlp_forward_impl.1} parent=1 // pred_fallthru
      _
    // Predicated region
    $region6: #{_mlp_forward_impl.1} parent=1 // pred_check
      _
    $region7: #{_mlp_forward_impl.1} parent=1 // pred_check_branch
      %18 = sbr.rel (0) target = $region9
    $region8: #{_mlp_forward_impl.1} parent=1 // pred_region
      %s20 = ssub.s32 512, 512
      %21 = vsyncadd [#allocation3], %s20
      %s22 = sshll.u32 [#allocation2], 4
      %s23 = int_to_ptr.vmem [resolvable:$true] %s22
      %28 = dma.hbm_to_vmem [thread:$0]  %s1, 512, %s23, [#allocation3], 128, 128, 8
    $region9: #{_mlp_forward_impl.1} parent=1 // pred_fallthru
      _
    // Predicated region
    $region10: #{_mlp_forward_impl.1} parent=1 // pred_check
      _
    $region11: #{_mlp_forward_impl.1} parent=1 // pred_check_branch
      %30 = sbr.rel (0) target = $region13
    $region12: #{_mlp_forward_impl.1} parent=1 // pred_region
      _
    $region13: #{_mlp_forward_impl.1} parent=1 // pred_fallthru
      _
    // Predicated region
    $region14: #{_mlp_forward_impl.1} parent=1 // pred_check
      _
    $region15: #{_mlp_forward_impl.1} parent=1 // pred_check_branch
      %32 = sbr.rel (0) target = $region17
    $region16: #{_mlp_forward_impl.1} parent=1 // pred_region
      %s34 = ssub.s32 2048, 2048
      %35 = vsyncadd [#allocation6], %s34
      %s36 = sshll.u32 [#allocation5], 4
      %s37 = int_to_ptr.vmem [resolvable:$true] %s36
      %42 = dma.hbm_to_vmem [thread:$0]  %s3, 2048, %s37, [#allocation6], 128, 128, 8
    $region17: #{_mlp_forward_impl.1} parent=1 // pred_fallthru
      _
    // Predicated region
    $region18: #{_mlp_forward_impl.1} parent=1 // pred_check
      _
    $region19: #{_mlp_forward_impl.1} parent=1 // pred_check_branch
      %44 = sbr.rel (0) target = $region21
    $region20: #{_mlp_forward_impl.1} parent=1 // pred_region
      _
    $region21: #{_mlp_forward_impl.1} parent=1 // pred_fallthru
      _
    // Predicated region
    $region22: #{_mlp_forward_impl.1} parent=1 // pred_check
      _
    $region23: #{_mlp_forward_impl.1} parent=1 // pred_check_branch
      %46 = sbr.rel (0) target = $region25
    $region24: #{_mlp_forward_impl.1} parent=1 // pred_region
      %s48 = ssub.s32 2048, 2048
      %49 = vsyncadd [#allocation6], %s48
      %s50 = sshll.u32 [#allocation7], 4
      %s51 = int_to_ptr.vmem [resolvable:$true] %s50
      %56 = dma.hbm_to_vmem [thread:$0]  %s5, 2048, %s51, [#allocation6], 128, 128, 8
    $region25: #{_mlp_forward_impl.1} parent=1 // pred_fallthru
      _
    // Predicated region
    $region26: #{_mlp_forward_impl.1} parent=1 // pred_check
      _
    $region27: #{_mlp_forward_impl.1} parent=1 // pred_check_branch
      %58 = sbr.rel (0) target = $region29
    $region28: #{_mlp_forward_impl.1} parent=1 // pred_region
      _
    $region29: #{_mlp_forward_impl.1} parent=1 // pred_fallthru
      _
    // Predicated region
    $region30: #{_mlp_forward_impl.1} parent=1 // pred_check
      _
    $region31: #{_mlp_forward_impl.1} parent=1 // pred_check_branch
      %60 = sbr.rel (0) target = $region33
    $region32: #{_mlp_forward_impl.1} parent=1 // pred_region
      %61 = dma.done [#allocation3], 512
    $region33: #{_mlp_forward_impl.1} parent=1 // pred_fallthru
      _
    // Predicated region
    $region34: #{_mlp_forward_impl.1} parent=1 // pred_check
      _
    $region35: #{_mlp_forward_impl.1} parent=1 // pred_check_branch
      %63 = sbr.rel (0) target = $region37
    $region36: #{_mlp_forward_impl.1} parent=1 // pred_region
      %64 = dma.done [#allocation6], 2048
    $region37: #{_mlp_forward_impl.1} parent=1 // pred_fallthru
      _
    // Predicated region
    $region38: #{_mlp_forward_impl.1} parent=1 // pred_check
      _
    $region39: #{_mlp_forward_impl.1} parent=1 // pred_check_branch
      %66 = sbr.rel (0) target = $region41
    $region40: #{_mlp_forward_impl.1} parent=1 // pred_region
      %67 = dma.done [#allocation6], 2048
    $region41: #{_mlp_forward_impl.1} parent=1 // pred_fallthru
      _
    %v68 = vld [vmem:[%s0] sm:$0xff]
    %v69 = vld [vmem:[#allocation2] sm:$0xff]
    %v70 = vld [vmem:[#allocation2 + $0x8] sm:$0xff]
    %v71 = vld [vmem:[#allocation2 + $0x10] sm:$0xff]
    %v72 = vld [vmem:[#allocation2 + $0x18] sm:$0xff]
    %v73 = vld [vmem:[%s2] sm:$0x1]
    %v75 = vlaneseq
    %v76 = vshrl.u32 %v75, 7
    %v77 = vsub.s32 0, %v76
    %v78 = vrot.slane %v73, %v77
    %vm80 = vcmask 261120
    %v82 = vsel %vm80, %v68, 0
    %84 = vmatprep.subr.mxu0 0.0
    %85 = vmatpush1.msra.mxu0 %v69
    %86 = vmatprep.subr.mxu0 0.0
    %87 = vmatpush1.msra.mxu0 %v70
    %88 = vmatprep.subr.mxu0 0.0
    %89 = vmatpush1.msra.mxu0 %v71
    %90 = vmatprep.subr.mxu0 0.0
    %91 = vmatpush1.msra.mxu0 %v72
    %92 = vmatprep.subr.mxu0 0.0
    %93 = vmatpush1.msra.mxu0 0.0
    %94 = vmatprep.subr.mxu0 0.0
    %95 = vmatpush1.msra.mxu0 0.0
    %96 = vmatprep.subr.mxu0 0.0
    %97 = vmatpush1.msra.mxu0 0.0
    %98 = vmatprep.subr.mxu0 0.0
    %99 = vmatpush1.msra.mxu0 0.0
    %100 = vmatprep.subr.mxu0 0.0
    %101 = vmatpush1.msra.mxu0 0.0
    %102 = vmatprep.subr.mxu0 0.0
    %103 = vmatpush1.msra.mxu0 0.0
    %104 = vmatprep.subr.mxu0 0.0
    %105 = vmatpush1.msra.mxu0 0.0
    %106 = vmatprep.subr.mxu0 0.0
    %107 = vmatpush1.msra.mxu0 0.0
    %108 = vmatprep.subr.mxu0 0.0
    %109 = vmatpush1.msra.mxu0 0.0
    %110 = vmatprep.subr.mxu0 0.0
    %111 = vmatpush1.msra.mxu0 0.0
    %112 = vmatprep.subr.mxu0 0.0
    %113 = vmatpush1.msra.mxu0 0.0
    %114 = vmatprep.subr.mxu0 0.0
    %115 = vmatpush1.msra.mxu0 0.0
    %116 = vmatprep.subr.mxu0 0.0
    %117 = vmatpush1.msra.mxu0 0.0
    %118 = vmatprep.subr.mxu0 0.0
    %119 = vmatpush1.msra.mxu0 0.0
    %120 = vmatprep.subr.mxu0 0.0
    %121 = vmatpush1.msra.mxu0 0.0
    %122 = vmatprep.subr.mxu0 0.0
    %123 = vmatpush1.msra.mxu0 0.0
    %124 = vmatprep.subr.mxu0 0.0
    %125 = vmatpush1.msra.mxu0 0.0
    %126 = vmatprep.subr.mxu0 0.0
    %127 = vmatpush1.msra.mxu0 0.0
    %128 = vmatprep.subr.mxu0 0.0
    %129 = vmatpush1.msra.mxu0 0.0
    %130 = vmatprep.subr.mxu0 0.0
    %131 = vmatpush1.msra.mxu0 0.0
    %132 = vmatprep.subr.mxu0 0.0
    %133 = vmatpush1.msra.mxu0 0.0
    %134 = vmatprep.subr.mxu0 0.0
    %135 = vmatpush1.msra.mxu0 0.0
    %136 = vmatprep.subr.mxu0 0.0
    %137 = vmatpush1.msra.mxu0 0.0
    %138 = vmatprep.subr.mxu0 0.0
    %139 = vmatpush1.msra.mxu0 0.0
    %140 = vmatprep.subr.mxu0 0.0
    %141 = vmatpush1.msra.mxu0 0.0
    %142 = vmatprep.subr.mxu0 0.0
    %143 = vmatpush1.msra.mxu0 0.0
    %144 = vmatprep.subr.mxu0 0.0
    %145 = vmatpush1.msra.mxu0 0.0
    %146 = vmatprep.subr.mxu0 0.0
    %147 = vmatpush1.msra.mxu0 0.0
    %148 = vmatprep.mubr.f32.mxu0 0.0
    %149 = vmatmul.mubr.f32.gmra.mrb[0].mxu0 %v82
    %v150 = vpop.f32.mrb[0].mxu0
    %v151 = vadd.f32 %v78, %v150
    %v152 = vpop.f32.mrb[0].mxu0
    %153 = vdwg.mxu0
    %v154 = vmax.f32 %v151, 0.0
    %v155 = vld [vmem:[#allocation5] sm:$0xff]
    %v156 = vld [vmem:[#allocation5 + $0x8] sm:$0xff]
    %v157 = vld [vmem:[#allocation5 + $0x10] sm:$0xff]
    %v158 = vld [vmem:[#allocation5 + $0x18] sm:$0xff]
    %v159 = vld [vmem:[#allocation5 + $0x20] sm:$0xff]
    %v160 = vld [vmem:[#allocation5 + $0x28] sm:$0xff]
    %v161 = vld [vmem:[#allocation5 + $0x30] sm:$0xff]
    %v162 = vld [vmem:[#allocation5 + $0x38] sm:$0xff]
    %v163 = vld [vmem:[#allocation5 + $0x40] sm:$0xff]
    %v164 = vld [vmem:[#allocation5 + $0x48] sm:$0xff]
    %v165 = vld [vmem:[#allocation5 + $0x50] sm:$0xff]
    %v166 = vld [vmem:[#allocation5 + $0x58] sm:$0xff]
    %v167 = vld [vmem:[#allocation5 + $0x60] sm:$0xff]
    %v168 = vld [vmem:[#allocation5 + $0x68] sm:$0xff]
    %v169 = vld [vmem:[#allocation5 + $0x70] sm:$0xff]
    %v170 = vld [vmem:[#allocation5 + $0x78] sm:$0xff]
    %v171 = vld [vmem:[%s4] sm:$0x1]
    %v173 = vlaneseq
    %v174 = vshrl.u32 %v173, 7
    %v175 = vsub.s32 0, %v174
    %v176 = vrot.slane %v171, %v175
    %178 = vmatprep.subr.mxu0 0.0
    %179 = vmatpush1.msra.mxu0 %v155
    %180 = vmatprep.subr.mxu0 0.0
    %181 = vmatpush1.msra.mxu0 %v156
    %182 = vmatprep.subr.mxu0 0.0
    %183 = vmatpush1.msra.mxu0 %v157
    %184 = vmatprep.subr.mxu0 0.0
    %185 = vmatpush1.msra.mxu0 %v158
    %186 = vmatprep.subr.mxu0 0.0
    %187 = vmatpush1.msra.mxu0 %v159
    %188 = vmatprep.subr.mxu0 0.0
    %189 = vmatpush1.msra.mxu0 %v160
    %190 = vmatprep.subr.mxu0 0.0
    %191 = vmatpush1.msra.mxu0 %v161
    %192 = vmatprep.subr.mxu0 0.0
    %193 = vmatpush1.msra.mxu0 %v162
    %194 = vmatprep.subr.mxu0 0.0
    %195 = vmatpush1.msra.mxu0 %v163
    %196 = vmatprep.subr.mxu0 0.0
    %197 = vmatpush1.msra.mxu0 %v164
    %198 = vmatprep.subr.mxu0 0.0
    %199 = vmatpush1.msra.mxu0 %v165
    %200 = vmatprep.subr.mxu0 0.0
    %201 = vmatpush1.msra.mxu0 %v166
    %202 = vmatprep.subr.mxu0 0.0
    %203 = vmatpush1.msra.mxu0 %v167
    %204 = vmatprep.subr.mxu0 0.0
    %205 = vmatpush1.msra.mxu0 %v168
    %206 = vmatprep.subr.mxu0 0.0
    %207 = vmatpush1.msra.mxu0 %v169
    %208 = vmatprep.subr.mxu0 0.0
    %209 = vmatpush1.msra.mxu0 %v170
    %210 = vmatprep.subr.mxu0 0.0
    %211 = vmatpush1.msra.mxu0 0.0
    %212 = vmatprep.subr.mxu0 0.0
    %213 = vmatpush1.msra.mxu0 0.0
    %214 = vmatprep.subr.mxu0 0.0
    %215 = vmatpush1.msra.mxu0 0.0
    %216 = vmatprep.subr.mxu0 0.0
    %217 = vmatpush1.msra.mxu0 0.0
    %218 = vmatprep.subr.mxu0 0.0
    %219 = vmatpush1.msra.mxu0 0.0
    %220 = vmatprep.subr.mxu0 0.0
    %221 = vmatpush1.msra.mxu0 0.0
    %222 = vmatprep.subr.mxu0 0.0
    %223 = vmatpush1.msra.mxu0 0.0
    %224 = vmatprep.subr.mxu0 0.0
    %225 = vmatpush1.msra.mxu0 0.0
    %226 = vmatprep.subr.mxu0 0.0
    %227 = vmatpush1.msra.mxu0 0.0
    %228 = vmatprep.subr.mxu0 0.0
    %229 = vmatpush1.msra.mxu0 0.0
    %230 = vmatprep.subr.mxu0 0.0
    %231 = vmatpush1.msra.mxu0 0.0
    %232 = vmatprep.subr.mxu0 0.0
    %233 = vmatpush1.msra.mxu0 0.0
    %234 = vmatprep.subr.mxu0 0.0
    %235 = vmatpush1.msra.mxu0 0.0
    %236 = vmatprep.subr.mxu0 0.0
    %237 = vmatpush1.msra.mxu0 0.0
    %238 = vmatprep.subr.mxu0 0.0
    %239 = vmatpush1.msra.mxu0 0.0
    %240 = vmatprep.subr.mxu0 0.0
    %241 = vmatpush1.msra.mxu0 0.0
    %242 = vmatprep.mubr.f32.mxu0 0.0
    %243 = vmatmul.mubr.f32.gmra.mrb[0].mxu0 %v154
    %v244 = vpop.f32.mrb[0].mxu0
    %v245 = vadd.f32 %v176, %v244
    %v246 = vpop.f32.mrb[0].mxu0
    %247 = vdwg.mxu0
    %v248 = vmax.f32 %v245, 0.0
    %v249 = vld [vmem:[#allocation7] sm:$0xff]
    %v250 = vld [vmem:[#allocation7 + $0x8] sm:$0xff]
    %v251 = vld [vmem:[#allocation7 + $0x10] sm:$0xff]
    %v252 = vld [vmem:[#allocation7 + $0x18] sm:$0xff]
    %v253 = vld [vmem:[#allocation7 + $0x20] sm:$0xff]
    %v254 = vld [vmem:[#allocation7 + $0x28] sm:$0xff]
    %v255 = vld [vmem:[#allocation7 + $0x30] sm:$0xff]
    %v256 = vld [vmem:[#allocation7 + $0x38] sm:$0xff]
    %v257 = vld [vmem:[#allocation7 + $0x40] sm:$0xff]
    %v258 = vld [vmem:[#allocation7 + $0x48] sm:$0xff]
    %v259 = vld [vmem:[#allocation7 + $0x50] sm:$0xff]
    %v260 = vld [vmem:[#allocation7 + $0x58] sm:$0xff]
    %v261 = vld [vmem:[#allocation7 + $0x60] sm:$0xff]
    %v262 = vld [vmem:[#allocation7 + $0x68] sm:$0xff]
    %v263 = vld [vmem:[#allocation7 + $0x70] sm:$0xff]
    %v264 = vld [vmem:[#allocation7 + $0x78] sm:$0xff]
    %v265 = vld [vmem:[%s6] sm:$0x1]
    %v267 = vlaneseq
    %v268 = vshrl.u32 %v267, 7
    %v269 = vsub.s32 0, %v268
    %v270 = vrot.slane %v265, %v269
    %272 = vmatprep.subr.mxu0 0.0
    %273 = vmatpush1.msra.mxu0 %v249
    %274 = vmatprep.subr.mxu0 0.0
    %275 = vmatpush1.msra.mxu0 %v250
    %276 = vmatprep.subr.mxu0 0.0
    %277 = vmatpush1.msra.mxu0 %v251
    %278 = vmatprep.subr.mxu0 0.0
    %279 = vmatpush1.msra.mxu0 %v252
    %280 = vmatprep.subr.mxu0 0.0
    %281 = vmatpush1.msra.mxu0 %v253
    %282 = vmatprep.subr.mxu0 0.0
    %283 = vmatpush1.msra.mxu0 %v254
    %284 = vmatprep.subr.mxu0 0.0
    %285 = vmatpush1.msra.mxu0 %v255
    %286 = vmatprep.subr.mxu0 0.0
    %287 = vmatpush1.msra.mxu0 %v256
    %288 = vmatprep.subr.mxu0 0.0
    %289 = vmatpush1.msra.mxu0 %v257
    %290 = vmatprep.subr.mxu0 0.0
    %291 = vmatpush1.msra.mxu0 %v258
    %292 = vmatprep.subr.mxu0 0.0
    %293 = vmatpush1.msra.mxu0 %v259
    %294 = vmatprep.subr.mxu0 0.0
    %295 = vmatpush1.msra.mxu0 %v260
    %296 = vmatprep.subr.mxu0 0.0
    %297 = vmatpush1.msra.mxu0 %v261
    %298 = vmatprep.subr.mxu0 0.0
    %299 = vmatpush1.msra.mxu0 %v262
    %300 = vmatprep.subr.mxu0 0.0
    %301 = vmatpush1.msra.mxu0 %v263
    %302 = vmatprep.subr.mxu0 0.0
    %303 = vmatpush1.msra.mxu0 %v264
    %304 = vmatprep.subr.mxu0 0.0
    %305 = vmatpush1.msra.mxu0 0.0
    %306 = vmatprep.subr.mxu0 0.0
    %307 = vmatpush1.msra.mxu0 0.0
    %308 = vmatprep.subr.mxu0 0.0
    %309 = vmatpush1.msra.mxu0 0.0
    %310 = vmatprep.subr.mxu0 0.0
    %311 = vmatpush1.msra.mxu0 0.0
    %312 = vmatprep.subr.mxu0 0.0
    %313 = vmatpush1.msra.mxu0 0.0
    %314 = vmatprep.subr.mxu0 0.0
    %315 = vmatpush1.msra.mxu0 0.0
    %316 = vmatprep.subr.mxu0 0.0
    %317 = vmatpush1.msra.mxu0 0.0
    %318 = vmatprep.subr.mxu0 0.0
    %319 = vmatpush1.msra.mxu0 0.0
    %320 = vmatprep.subr.mxu0 0.0
    %321 = vmatpush1.msra.mxu0 0.0
    %322 = vmatprep.subr.mxu0 0.0
    %323 = vmatpush1.msra.mxu0 0.0
    %324 = vmatprep.subr.mxu0 0.0
    %325 = vmatpush1.msra.mxu0 0.0
    %326 = vmatprep.subr.mxu0 0.0
    %327 = vmatpush1.msra.mxu0 0.0
    %328 = vmatprep.subr.mxu0 0.0
    %329 = vmatpush1.msra.mxu0 0.0
    %330 = vmatprep.subr.mxu0 0.0
    %331 = vmatpush1.msra.mxu0 0.0
    %332 = vmatprep.subr.mxu0 0.0
    %333 = vmatpush1.msra.mxu0 0.0
    %334 = vmatprep.subr.mxu0 0.0
    %335 = vmatpush1.msra.mxu0 0.0
    %336 = vmatprep.mubr.f32.mxu0 0.0
    %337 = vmatmul.mubr.f32.gmra.mrb[0].mxu0 %v248
    %v338 = vpop.f32.mrb[0].mxu0
    %v339 = vadd.f32 %v270, %v338
    %v340 = vpop.f32.mrb[0].mxu0
    %341 = vdwg.mxu0
    %v342 = vxor.u32 %v339, 2147483648
    %v343 = vmul.f32 %v342, 1.442695
    %v344 = vpow.pop %v343
    %v345 = vadd.f32 %v344, 1.0
    %v346 = vrcp.pop %v345
    %v347 = vmul.f32 1.0, %v346
    %348 = vst [vmem:[#allocation8] sm:$0xff] %v347
    // Predicated region
    $region42: #{_mlp_forward_impl.1} parent=1 // pred_check
      _
    $region43: #{_mlp_forward_impl.1} parent=1 // pred_check_branch
      %350 = sbr.rel (0) target = $region45
    $region44: #{_mlp_forward_impl.1} parent=1 // pred_region
      %s352 = ssub.s32 128, 128
      %353 = vsyncadd [#allocation4], %s352
      %s355 = sshll.u32 [#allocation8], 4
      %s356 = int_to_ptr.vmem [resolvable:$true] %s355
      %358 = dma.vmem_to_hbm [thread:$0]  %s356, 128, %s7, [#allocation4]
    $region45: #{_mlp_forward_impl.1} parent=1 // pred_fallthru
      _
    // Predicated region
    $region46: #{_mlp_forward_impl.1} parent=1 // pred_check
      _
    $region47: #{_mlp_forward_impl.1} parent=1 // pred_check_branch
      %360 = sbr.rel (0) target = $region49
    $region48: #{_mlp_forward_impl.1} parent=1 // pred_region
      %361 = dma.done [#allocation4], 128
    $region49: #{_mlp_forward_impl.1} parent=1 // pred_fallthru
      _
    %362 = vsyncpa [#allocation3], 1
    %363 = vsyncpa [#allocation6], 1
    %364 = vsyncpa [#allocation4], 1

</llo_original>
